<compile_context>
chip_gen: v7x
topology: tpu7x:2x2x1
jax: 0.10.0
libtpu: 0.0.40
codegen_flags: <defaults>
</compile_context>

<pallas_src>
import functools

import jax
import jax.numpy as jnp
from jax.experimental import pallas as pl
from jax.experimental.pallas import tpu as pltpu


def _std_dense_kernel(seed_ref, x_ref, wt_ref, b_ref, gamma_ref, beta_ref,
                      o_ref, *, p, eps, training, tile_f):
    # ---- Linear: x @ W^T + b  (bf16 MXU matmul, f32 accumulation) ----
    h = jnp.dot(x_ref[...], wt_ref[...], preferred_element_type=jnp.float32)
    h = h + b_ref[...]                                    # (N, tf) + (1, tf)

    # ---- Dropout(p), train mode (inverted dropout, integer threshold) ----
    if training and p > 0.0:
        n, f = h.shape
        j = pl.program_id(0)
        rows = jax.lax.broadcasted_iota(jnp.int32, (n, f), 0).astype(jnp.uint32)
        cols = jax.lax.broadcasted_iota(jnp.int32, (n, f), 1).astype(jnp.uint32)
        col_g = cols + (j * tile_f).astype(jnp.uint32)    # global feature index
        seed = seed_ref[0].astype(jnp.uint32)
        # splitmix-style mix of (seed, row, global col) -> uniform u32 bits
        z = (seed * jnp.uint32(0x9E3779B1)
             + rows * jnp.uint32(0x85EBCA77)
             + col_g * jnp.uint32(0xC2B2AE3D))
        z = (z ^ (z >> 16)) * jnp.uint32(0x7FEB352D)
        z = (z ^ (z >> 15)) * jnp.uint32(0x846CA68B)
        bits = z ^ (z >> 16)
        threshold = jnp.uint32(int(round(p * 4294967296.0)) & 0xFFFFFFFF)
        keep = bits >= threshold                          # P(keep) = 1 - p
        h = jnp.where(keep, h * jnp.float32(1.0 / (1.0 - p)), jnp.float32(0.0))

    # ---- ReLU ----
    h = jnp.maximum(h, 0.0)

    # ---- BatchNorm1d, train mode: batch mean / biased variance over rows ----
    mean = jnp.mean(h, axis=0, keepdims=True)             # (1, tf)
    xc = h - mean                                         # centered, reused
    var = jnp.mean(xc * xc, axis=0, keepdims=True)        # biased variance
    scale = jax.lax.rsqrt(var + jnp.float32(eps)) * gamma_ref[...]   # (1, tf)
    o_ref[...] = (xc * scale + beta_ref[...]).astype(o_ref.dtype)


def _pick_tile_f(fout):
    for t in (512, 256, 128):
        if fout % t == 0:
            return t
    return fout  # full-width block (allowed when it equals the array dim)


def std_dense_forward(x, w, b, gamma, beta, seed, *, p=0.1, eps=1e-5,
                      training=True, matmul_dtype=jnp.bfloat16):
    """x: (N, Fin); w: (Fout, Fin) (PyTorch layout); b/gamma/beta: (Fout,)."""
    n, fin = x.shape
    fout = w.shape[0]
    tile_f = _pick_tile_f(fout)
    grid = (fout // tile_f,)

    # Host-side prep (once per call; cache W^T outside a training loop if the
    # weight is reused).
    x_mm = jnp.asarray(x).astype(matmul_dtype)
    w_t = jnp.asarray(w, jnp.float32).T.astype(matmul_dtype)   # (Fin, Fout)
    b2 = jnp.asarray(b, jnp.float32).reshape(1, fout)
    g2 = jnp.asarray(gamma, jnp.float32).reshape(1, fout)
    be2 = jnp.asarray(beta, jnp.float32).reshape(1, fout)
    seed_arr = jnp.asarray([seed], jnp.int32)

    kernel = functools.partial(_std_dense_kernel, p=float(p), eps=float(eps),
                               training=bool(training), tile_f=tile_f)

    # VMEM budget: resident x + double-buffered W / per-feature vectors / out.
    isz = jnp.dtype(matmul_dtype).itemsize
    est = (n * fin * isz                        # x, resident
           + 2 * fin * tile_f * isz             # W^T tile, double-buffered
           + 2 * n * tile_f * 4                 # output tile, double-buffered
           + 2 * 3 * tile_f * 4)                # bias/gamma/beta tiles
    vmem_limit = int(min(max(2 * est, 4 << 20), 64 << 20))

    return pl.pallas_call(
        kernel,
        out_shape=jax.ShapeDtypeStruct((n, fout), jnp.float32),
        grid=grid,
        in_specs=[
            pl.BlockSpec(memory_space=pltpu.MemorySpace.SMEM),        # seed
            pl.BlockSpec((n, fin), lambda j: (0, 0)),                 # x (resident)
            pl.BlockSpec((fin, tile_f), lambda j: (0, j)),            # W^T tile
            pl.BlockSpec((1, tile_f), lambda j: (0, j)),              # bias
            pl.BlockSpec((1, tile_f), lambda j: (0, j)),              # gamma
            pl.BlockSpec((1, tile_f), lambda j: (0, j)),              # beta
        ],
        out_specs=pl.BlockSpec((n, tile_f), lambda j: (0, j)),
        compiler_params=pltpu.CompilerParams(
            dimension_semantics=("parallel",),
            vmem_limit_bytes=vmem_limit),
    )(seed_arr, x_mm, w_t, b2, g2, be2)


if __name__ == "__main__":
    # Small shapes consistent with a dense layer: batch=16, in=32, out=128.
    N, F_IN, F_OUT = 16, 32, 128

    key = jax.random.PRNGKey(0)
    kx, kw, kb = jax.random.split(key, 3)

    x = jax.random.normal(kx, (N, F_IN), dtype=jnp.float32)

    # nn.Linear default init: W, b ~ U(-1/sqrt(Fin), 1/sqrt(Fin)); BN: gamma=1, beta=0.
    bound = 1.0 / (F_IN ** 0.5)
    w = jax.random.uniform(kw, (F_OUT, F_IN), jnp.float32, -bound, bound)
    b = jax.random.uniform(kb, (F_OUT,), jnp.float32, -bound, bound)
    gamma = jnp.ones((F_OUT,), jnp.float32)
    beta = jnp.zeros((F_OUT,), jnp.float32)

    # Train-mode run (dropout active, BN uses batch statistics).
    out = std_dense_forward(x, w, b, gamma, beta, seed=0,
                            p=0.1, eps=1e-5, training=True)
    out = jax.block_until_ready(out)
    assert out.shape == (N, F_OUT) and out.dtype == jnp.float32
    assert bool(jnp.all(jnp.isfinite(out)))

    # Numerical check against a pure-JAX reference with dropout disabled
    # (the dropout bitstream is PRNG-implementation specific).
    out_nd = jax.block_until_ready(
        std_dense_forward(x, w, b, gamma, beta, seed=0,
                          p=0.0, eps=1e-5, training=True))
    xb = x.astype(jnp.bfloat16).astype(jnp.float32)
    wb = w.astype(jnp.bfloat16).astype(jnp.float32)
    h = jnp.maximum(xb @ wb.T + b[None, :], 0.0)
    mean = h.mean(axis=0, keepdims=True)
    var = ((h - mean) ** 2).mean(axis=0, keepdims=True)
    ref = (h - mean) * jax.lax.rsqrt(var + 1e-5) * gamma[None, :] + beta[None, :]
    assert bool(jnp.allclose(out_nd, ref, atol=5e-2, rtol=5e-2))

    print("KERNEL_OK")
</pallas_src>

<mosaic_0001>
module attributes {stable_mosaic.version = 11 : i64} {
  func.func @_std_dense_kernel(%arg0: i32, %arg1: memref<1xi32, #tpu.memory_space<smem>>, %arg2: memref<16x32xbf16, #tpu.memory_space<vmem>>, %arg3: memref<32x128xbf16, #tpu.memory_space<vmem>>, %arg4: memref<1x128xf32, #tpu.memory_space<vmem>>, %arg5: memref<1x128xf32, #tpu.memory_space<vmem>>, %arg6: memref<1x128xf32, #tpu.memory_space<vmem>>, %arg7: memref<16x128xf32, #tpu.memory_space<vmem>>) attributes {dimension_semantics = [#tpu.dimension_semantics<parallel>], iteration_bounds = array<i64: 1>, scalar_prefetch = 0 : i64, scratch_operands = 0 : i64, tpu.core_type = #tpu.core_type<tc>, window_params = [{transform_indices = @transform_0, window_bounds = array<i64: 1>}, {pipeline_mode = #tpu.pipeline_mode<synchronous>, transform_indices = @transform_1, window_bounds = array<i64: 16, 32>}, {transform_indices = @transform_2, window_bounds = array<i64: 32, 128>}, {transform_indices = @transform_3, window_bounds = array<i64: 1, 128>}, {transform_indices = @transform_4, window_bounds = array<i64: 1, 128>}, {transform_indices = @transform_5, window_bounds = array<i64: 1, 128>}, {transform_indices = @transform_6, window_bounds = array<i64: 16, 128>}]} {
    %c0 = arith.constant 0 : index
    %c0_0 = arith.constant 0 : index
    %0 = vector.load %arg2[%c0, %c0_0] : memref<16x32xbf16, #tpu.memory_space<vmem>>, vector<16x32xbf16>
    %c0_1 = arith.constant 0 : index
    %c0_2 = arith.constant 0 : index
    %1 = vector.load %arg3[%c0_1, %c0_2] : memref<32x128xbf16, #tpu.memory_space<vmem>>, vector<32x128xbf16>
    %cst = arith.constant dense<0.000000e+00> : vector<16x128xf32>
    %2 = tpu.matmul %0, %1, %cst {dimension_numbers = #tpu.dot_dimension_numbers<[1], [0], [0], [1], [0, 0, 1, 1], [], []>} : vector<16x32xbf16>, vector<32x128xbf16>, vector<16x128xf32> -> vector<16x128xf32>
    %c0_3 = arith.constant 0 : index
    %c0_4 = arith.constant 0 : index
    %3 = vector.load %arg4[%c0_3, %c0_4] : memref<1x128xf32, #tpu.memory_space<vmem>>, vector<1x128xf32>
    %4 = vector.broadcast %3 : vector<1x128xf32> to vector<16x128xf32>
    %5 = arith.addf %2, %4 : vector<16x128xf32>
    %6 = tpu.iota {dimensions = array<i32: 0>} : vector<16x128xi32>
    %7 = tpu.iota {dimensions = array<i32: 1>} : vector<16x128xi32>
    %c128_i32 = arith.constant 128 : i32
    %8 = arith.muli %arg0, %c128_i32 : i32
    %9 = vector.broadcast %8 : i32 to vector<16x128xi32>
    %10 = arith.addi %7, %9 : vector<16x128xi32>
    %c0_5 = arith.constant 0 : index
    %11 = memref.load %arg1[%c0_5] : memref<1xi32, #tpu.memory_space<smem>>
    %c-1640531535_i32 = arith.constant -1640531535 : i32
    %12 = arith.muli %11, %c-1640531535_i32 : i32
    %c-2048144777_i32 = arith.constant -2048144777 : i32
    %13 = vector.broadcast %c-2048144777_i32 : i32 to vector<16x128xi32>
    %14 = arith.muli %6, %13 : vector<16x128xi32>
    %15 = vector.broadcast %12 : i32 to vector<16x128xi32>
    %16 = arith.addi %15, %14 : vector<16x128xi32>
    %c-1028477379_i32 = arith.constant -1028477379 : i32
    %17 = vector.broadcast %c-1028477379_i32 : i32 to vector<16x128xi32>
    %18 = arith.muli %10, %17 : vector<16x128xi32>
    %19 = arith.addi %16, %18 : vector<16x128xi32>
    %c16_i32 = arith.constant 16 : i32
    %20 = vector.broadcast %c16_i32 : i32 to vector<16x128xi32>
    %21 = arith.shrui %19, %20 : vector<16x128xi32>
    %22 = arith.xori %19, %21 : vector<16x128xi32>
    %c2146121005_i32 = arith.constant 2146121005 : i32
    %23 = vector.broadcast %c2146121005_i32 : i32 to vector<16x128xi32>
    %24 = arith.muli %22, %23 : vector<16x128xi32>
    %c15_i32 = arith.constant 15 : i32
    %25 = vector.broadcast %c15_i32 : i32 to vector<16x128xi32>
    %26 = arith.shrui %24, %25 : vector<16x128xi32>
    %27 = arith.xori %24, %26 : vector<16x128xi32>
    %c-2073254261_i32 = arith.constant -2073254261 : i32
    %28 = vector.broadcast %c-2073254261_i32 : i32 to vector<16x128xi32>
    %29 = arith.muli %27, %28 : vector<16x128xi32>
    %c16_i32_6 = arith.constant 16 : i32
    %30 = vector.broadcast %c16_i32_6 : i32 to vector<16x128xi32>
    %31 = arith.shrui %29, %30 : vector<16x128xi32>
    %32 = arith.xori %29, %31 : vector<16x128xi32>
    %c429496730_i32 = arith.constant 429496730 : i32
    %33 = vector.broadcast %c429496730_i32 : i32 to vector<16x128xi32>
    %34 = arith.cmpi uge, %32, %33 : vector<16x128xi32>
    %cst_7 = arith.constant 1.11111116 : f32
    %35 = vector.broadcast %cst_7 : f32 to vector<16x128xf32>
    %36 = arith.mulf %5, %35 : vector<16x128xf32>
    %cst_8 = arith.constant 0.000000e+00 : f32
    %37 = vector.broadcast %cst_8 : f32 to vector<16x128xf32>
    %38 = arith.select %34, %36, %37 : vector<16x128xi1>, vector<16x128xf32>
    %cst_9 = arith.constant 0.000000e+00 : f32
    %39 = vector.broadcast %cst_9 : f32 to vector<16x128xf32>
    %40 = arith.maximumf %38, %39 : vector<16x128xf32>
    %cst_10 = arith.constant dense<0.000000e+00> : vector<128xf32>
    %41 = vector.multi_reduction <add>, %40, %cst_10 [0] : vector<16x128xf32> to vector<128xf32>
    %42 = vector.shape_cast %41 : vector<128xf32> to vector<1x128xf32>
    %cst_11 = arith.constant 1.600000e+01 : f32
    %43 = vector.broadcast %cst_11 : f32 to vector<1x128xf32>
    %44 = arith.divf %42, %43 : vector<1x128xf32>
    %45 = vector.broadcast %44 : vector<1x128xf32> to vector<16x128xf32>
    %46 = arith.subf %40, %45 : vector<16x128xf32>
    %47 = arith.mulf %46, %46 : vector<16x128xf32>
    %cst_12 = arith.constant dense<0.000000e+00> : vector<128xf32>
    %48 = vector.multi_reduction <add>, %47, %cst_12 [0] : vector<16x128xf32> to vector<128xf32>
    %49 = vector.shape_cast %48 : vector<128xf32> to vector<1x128xf32>
    %cst_13 = arith.constant 1.600000e+01 : f32
    %50 = vector.broadcast %cst_13 : f32 to vector<1x128xf32>
    %51 = arith.divf %49, %50 : vector<1x128xf32>
    %cst_14 = arith.constant 9.99999974E-6 : f32
    %52 = vector.broadcast %cst_14 : f32 to vector<1x128xf32>
    %53 = arith.addf %51, %52 : vector<1x128xf32>
    %54 = math.rsqrt %53 : vector<1x128xf32>
    %c0_15 = arith.constant 0 : index
    %c0_16 = arith.constant 0 : index
    %55 = vector.load %arg5[%c0_15, %c0_16] : memref<1x128xf32, #tpu.memory_space<vmem>>, vector<1x128xf32>
    %56 = arith.mulf %54, %55 : vector<1x128xf32>
    %57 = vector.broadcast %56 : vector<1x128xf32> to vector<16x128xf32>
    %58 = arith.mulf %46, %57 : vector<16x128xf32>
    %c0_17 = arith.constant 0 : index
    %c0_18 = arith.constant 0 : index
    %59 = vector.load %arg6[%c0_17, %c0_18] : memref<1x128xf32, #tpu.memory_space<vmem>>, vector<1x128xf32>
    %60 = vector.broadcast %59 : vector<1x128xf32> to vector<16x128xf32>
    %61 = arith.addf %58, %60 : vector<16x128xf32>
    %c0_19 = arith.constant 0 : index
    %c0_20 = arith.constant 0 : index
    %62 = vector.load %arg7[%c0_19, %c0_20] : memref<16x128xf32, #tpu.memory_space<vmem>>, vector<16x128xf32>
    tpu.vector_store %arg7[%c0_19, %c0_20], %61 {strides = array<i32>} : memref<16x128xf32, #tpu.memory_space<vmem>>, vector<16x128xf32>,
    return
  }
  func.func @transform_0(%arg0: i32) -> i32 {
    %c0_i32 = arith.constant 0 : i32
    %c0_i32_0 = arith.constant 0 : i32
    return %c0_i32 : i32
  }
  func.func @transform_1(%arg0: i32) -> (i32, i32) {
    %c0_i32 = arith.constant 0 : i32
    %c0_i32_0 = arith.constant 0 : i32
    %c0_i32_1 = arith.constant 0 : i32
    return %c0_i32, %c0_i32_0 : i32, i32
  }
  func.func @transform_2(%arg0: i32) -> (i32, i32) {
    %c0_i32 = arith.constant 0 : i32
    %c0_i32_0 = arith.constant 0 : i32
    return %c0_i32, %arg0 : i32, i32
  }
  func.func @transform_3(%arg0: i32) -> (i32, i32) {
    %c0_i32 = arith.constant 0 : i32
    %c0_i32_0 = arith.constant 0 : i32
    return %c0_i32, %arg0 : i32, i32
  }
  func.func @transform_4(%arg0: i32) -> (i32, i32) {
    %c0_i32 = arith.constant 0 : i32
    %c0_i32_0 = arith.constant 0 : i32
    return %c0_i32, %arg0 : i32, i32
  }
  func.func @transform_5(%arg0: i32) -> (i32, i32) {
    %c0_i32 = arith.constant 0 : i32
    %c0_i32_0 = arith.constant 0 : i32
    return %c0_i32, %arg0 : i32, i32
  }
  func.func @transform_6(%arg0: i32) -> (i32, i32) {
    %c0_i32 = arith.constant 0 : i32
    %c0_i32_0 = arith.constant 0 : i32
    return %c0_i32, %arg0 : i32, i32
  }
}

</mosaic_0001>

<llo_original>
// kernel: tpu_custom_call.1
$region0: #{tpu_custom_call.1}
  #allocation0 [shape = 'u32[]', space=smem, size = 0x4, offset = 0x4, fixed_abs, tag = 'smem constant byte address 0x4 - core index']
  #allocation1 [shape = 'u32[144,128]{1,0:T(1,128)}', space=vmem, size = 0x12000, scoped, tag = 'internal scratch']
  #allocation2 [shape = 's32[1]{0:T(128)S(6)}', space=smem, size = 0x200, scoped, tag = 'scoped memory for tpu_custom_call.1']
  %s0 = inlined_call_operand.<no memory space> [shape: s32[1], index: 0, kind: input, shape index: {}]
  %s1 = inlined_call_operand.hbm [shape: bf16[16,32], index: 1, kind: input, shape index: {}]
  %s2 = inlined_call_operand.hbm [shape: bf16[32,128], index: 2, kind: input, shape index: {}]
  %s3 = inlined_call_operand.vmem [shape: f32[1,128], index: 3, kind: input, shape index: {}]
  %s4 = inlined_call_operand.vmem [shape: f32[1,128], index: 4, kind: input, shape index: {}]
  %s5 = inlined_call_operand.vmem [shape: f32[1,128], index: 5, kind: input, shape index: {}]
  %s6 = inlined_call_operand.hbm [shape: f32[16,128], index: 6, kind: output, shape index: {}]
  %s7 = sld [smem:[#allocation0]]
  $region42: #{tpu_custom_call.1} parent=0
    _
  %s9 = ssub.s32 1, %s7
  %s10 = scalar_select 0, %s9, %s7
  %11 = sst [smem:[#allocation2]] %s0
  $region1: #{tpu_custom_call.1} parent=0
    #allocation3 [shape = 'u8[4096]{0}', space=vmem, size = 0x1000, scoped, tag = 'input window, operand 1, single buffered']
    #allocation4 [shape = 's32[1]{0}', space=sflag, size = 0x4, scoped, tag = 'scoped memory for tpu_custom_call.1']
    #allocation5 [shape = 's32[1]{0}', space=sflag, size = 0x4, scoped, tag = 'scoped memory for tpu_custom_call.1']
    #allocation6 [shape = 'u8[8192]{0}', space=vmem, size = 0x2000, scoped, tag = 'input window, operand 2, single buffered']
    #allocation7 [shape = 's32[1]{0}', space=sflag, size = 0x4, scoped, tag = 'scoped memory for tpu_custom_call.1']
    #allocation8 [shape = 'u8[8192]{0}', space=vmem, size = 0x2000, scoped, tag = 'output window, operand 0, single buffered']
    %12 = vsyncpa [#allocation4], 0
    %13 = vsyncpa [#allocation7], 0
    %14 = vsyncpa [#allocation5], 0
    // Predicated region
    $region2: #{tpu_custom_call.1} parent=1 // pred_check
      _
    $region3: #{tpu_custom_call.1} parent=1 // pred_check_branch
      %16 = sbr.rel (0) target = $region5
    $region4: #{tpu_custom_call.1} parent=1 // pred_region
      _
    $region5: #{tpu_custom_call.1} parent=1 // pred_fallthru
      _
    // Predicated region
    $region6: #{tpu_custom_call.1} parent=1 // pred_check
      _
    $region7: #{tpu_custom_call.1} parent=1 // pred_check_branch
      %18 = sbr.rel (0) target = $region9
    $region8: #{tpu_custom_call.1} parent=1 // pred_region
      %s20 = ssub.s32 128, 128
      %21 = vsyncadd [#allocation4], %s20
      %s22 = sshll.u32 [#allocation3], 4
      %s23 = int_to_ptr.vmem [resolvable:$true] %s22
      %28 = dma.hbm_to_vmem [thread:$0]  %s1, 128, %s23, [#allocation4], 64, 64, 4
    $region9: #{tpu_custom_call.1} parent=1 // pred_fallthru
      _
    // Predicated region
    $region10: #{tpu_custom_call.1} parent=1 // pred_check
      _
    $region11: #{tpu_custom_call.1} parent=1 // pred_check_branch
      %30 = sbr.rel (0) target = $region13
    $region12: #{tpu_custom_call.1} parent=1 // pred_region
      %s32 = ssub.s32 256, 256
      %33 = vsyncadd [#allocation7], %s32
      %s34 = sshll.u32 [#allocation6], 4
      %s35 = int_to_ptr.vmem [resolvable:$true] %s34
      %40 = dma.hbm_to_vmem [thread:$0]  %s2, 256, %s35, [#allocation7], 64, 64, 4
    $region13: #{tpu_custom_call.1} parent=1 // pred_fallthru
      _
    // Predicated region
    $region14: #{tpu_custom_call.1} parent=1 // pred_check
      _
    $region15: #{tpu_custom_call.1} parent=1 // pred_check_branch
      %42 = sbr.rel (0) target = $region17
    $region16: #{tpu_custom_call.1} parent=1 // pred_region
      _
    $region17: #{tpu_custom_call.1} parent=1 // pred_fallthru
      _
    // Predicated region
    $region18: #{tpu_custom_call.1} parent=1 // pred_check
      _
    $region19: #{tpu_custom_call.1} parent=1 // pred_check_branch
      %44 = sbr.rel (0) target = $region21
    $region20: #{tpu_custom_call.1} parent=1 // pred_region
      _
    $region21: #{tpu_custom_call.1} parent=1 // pred_fallthru
      _
    // Predicated region
    $region22: #{tpu_custom_call.1} parent=1 // pred_check
      _
    $region23: #{tpu_custom_call.1} parent=1 // pred_check_branch
      %46 = sbr.rel (0) target = $region25
    $region24: #{tpu_custom_call.1} parent=1 // pred_region
      _
    $region25: #{tpu_custom_call.1} parent=1 // pred_fallthru
      _
    // Predicated region
    $region26: #{tpu_custom_call.1} parent=1 // pred_check
      _
    $region27: #{tpu_custom_call.1} parent=1 // pred_check_branch
      %48 = sbr.rel (0) target = $region29
    $region28: #{tpu_custom_call.1} parent=1 // pred_region
      %49 = dma.done [#allocation4], 128
    $region29: #{tpu_custom_call.1} parent=1 // pred_fallthru
      _
    // Predicated region
    $region30: #{tpu_custom_call.1} parent=1 // pred_check
      _
    $region31: #{tpu_custom_call.1} parent=1 // pred_check_branch
      %51 = sbr.rel (0) target = $region33
    $region32: #{tpu_custom_call.1} parent=1 // pred_region
      %52 = dma.done [#allocation7], 256
    $region33: #{tpu_custom_call.1} parent=1 // pred_fallthru
      _
    %v54 = vld [vmem:[#allocation3] sm:$0xf]
    %v55 = vld [vmem:[#allocation3 + $0x4] sm:$0xf]
    %v56 = vld [vmem:[#allocation6] sm:$0xf]
    %v57 = vld [vmem:[#allocation6 + $0x4] sm:$0xf]
    %v58 = vld [vmem:[#allocation6 + $0x8] sm:$0xf]
    %v59 = vld [vmem:[#allocation6 + $0xc] sm:$0xf]
    %v60 = vld [vmem:[%s3] sm:$0x1]
    %v62 = vlaneseq
    %v63 = vshrl.u32 %v62, 7
    %v64 = vsub.s32 0, %v63
    %v65 = vrot.slane %v60, %v64
    %v69 = vunpack.c.l.b16 %v54
    %v70 = vunpack.c.l.b16 %v55
    %v71 = vpack.c.b16 %v70, %v69
    %v76 = vunpack.c.l.b16 %v56
    %v77 = vunpack.c.l.b16 %v57
    %v78 = vunpack.c.l.b16 %v58
    %v79 = vunpack.c.l.b16 %v59
    %v80 = vpack.c.b16 %v77, %v76
    %v81 = vpack.c.b16 %v79, %v78
    %vm84 = vcmask 261120
    %v86 = vsel %vm84, %v71, 0
    %88 = vmatprep.subr.bf16.mxu0 0
    %89 = vmatpush1.bf16.msra.mxu0 %v80
    %90 = vmatprep.subr.bf16.mxu0 0
    %91 = vmatpush1.bf16.msra.mxu0 %v81
    %92 = vmatprep.subr.bf16.mxu0 0
    %93 = vmatpush1.bf16.msra.mxu0 0
    %94 = vmatprep.subr.bf16.mxu0 0
    %95 = vmatpush1.bf16.msra.mxu0 0
    %96 = vmatprep.subr.bf16.mxu0 0
    %97 = vmatpush1.bf16.msra.mxu0 0
    %98 = vmatprep.subr.bf16.mxu0 0
    %99 = vmatpush1.bf16.msra.mxu0 0
    %100 = vmatprep.subr.bf16.mxu0 0
    %101 = vmatpush1.bf16.msra.mxu0 0
    %102 = vmatprep.subr.bf16.mxu0 0
    %103 = vmatpush1.bf16.msra.mxu0 0
    %104 = vmatprep.subr.bf16.mxu0 0
    %105 = vmatpush1.bf16.msra.mxu0 0
    %106 = vmatprep.subr.bf16.mxu0 0
    %107 = vmatpush1.bf16.msra.mxu0 0
    %108 = vmatprep.subr.bf16.mxu0 0
    %109 = vmatpush1.bf16.msra.mxu0 0
    %110 = vmatprep.subr.bf16.mxu0 0
    %111 = vmatpush1.bf16.msra.mxu0 0
    %112 = vmatprep.subr.bf16.mxu0 0
    %113 = vmatpush1.bf16.msra.mxu0 0
    %114 = vmatprep.subr.bf16.mxu0 0
    %115 = vmatpush1.bf16.msra.mxu0 0
    %116 = vmatprep.subr.bf16.mxu0 0
    %117 = vmatpush1.bf16.msra.mxu0 0
    %118 = vmatprep.subr.bf16.mxu0 0
    %119 = vmatpush1.bf16.msra.mxu0 0
    %120 = vmatprep.mubr.bf16.mxu0 0
    %121 = vmatmul.mubr.bf16.gmra.mrb[0].mxu0 %v86
    %v122 = vpop.f32.mrb[0].mxu0
    %v123 = vadd.f32 %v65, %v122
    %v124 = vpop.f32.mrb[0].mxu0
    %v125 = vpop.f32.mrb[0].mxu0
    %v126 = vadd.f32 %v65, %v125
    %v127 = vpop.f32.mrb[0].mxu0
    %128 = vdwg.mxu0
    %v129 = vlaneseq
    %v130 = vshrl.u32 %v129, 7
    %v131 = vadd.s32 %v130, 8
    %v132 = vlaneseq
    %v133 = vand.u32 %v132, 127
    %s134 = smul.u32 0, 128
    %v135 = vstv %s134
    %v136 = vadd.s32 %v133, %v135
    %s137 = sld [smem:[#allocation2]]
    %s138 = smul.u32 %s137, 2654435761
    %v139 = vmul.u32 %v130, 2246822519
    %v140 = vmul.u32 %v131, 2246822519
    %v141 = vstv %s138
    %v142 = vadd.s32 %v141, %v139
    %v143 = vadd.s32 %v141, %v140
    %v144 = vmul.u32 %v136, 3266489917
    %v145 = vadd.s32 %v142, %v144
    %v146 = vadd.s32 %v143, %v144
    %v147 = vshrl.u32 %v145, 16
    %v148 = vshrl.u32 %v146, 16
    %v149 = vxor.u32 %v145, %v147
    %v150 = vxor.u32 %v146, %v148
    %v151 = vmul.u32 %v149, 2146121005
    %v152 = vmul.u32 %v150, 2146121005
    %v153 = vshrl.u32 %v151, 15
    %v154 = vshrl.u32 %v152, 15
    %v155 = vxor.u32 %v151, %v153
    %v156 = vxor.u32 %v152, %v154
    %v157 = vmul.u32 %v155, 2221713035
    %v158 = vmul.u32 %v156, 2221713035
    %v159 = vshrl.u32 %v157, 16
    %v160 = vshrl.u32 %v158, 16
    %v161 = vxor.u32 %v157, %v159
    %v162 = vxor.u32 %v158, %v160
    %vm163 = vcmp.ge.u32.totalorder %v161, 429496730
    %vm164 = vcmp.ge.u32.totalorder %v162, 429496730
    %v165 = vmul.f32 %v123, 1.1111112
    %v166 = vmul.f32 %v126, 1.1111112
    %v167 = vsel %vm163, %v165, 0.0
    %v168 = vsel %vm164, %v166, 0.0
    %v169 = vmax.f32 %v167, 0.0
    %v170 = vmax.f32 %v168, 0.0
    %v171 = vadd.f32 %v169, %v170
    %v172 = vrot.slane %v171, 4
    %v173 = vadd.f32 %v171, %v172
    %v174 = vrot.slane %v173, 2
    %v175 = vadd.f32 %v173, %v174
    %v176 = vrot.slane %v175, 1
    %v177 = vadd.f32 %v175, %v176
    %v178 = vrcp.pop 16.0
    %v179 = vmul.f32 %v177, %v178
    %v180 = vsub.f32 %v169, %v179
    %v181 = vsub.f32 %v170, %v179
    %v182 = vmul.f32 %v180, %v180
    %v183 = vmul.f32 %v181, %v181
    %v184 = vadd.f32 %v182, %v183
    %v185 = vrot.slane %v184, 4
    %v186 = vadd.f32 %v184, %v185
    %v187 = vrot.slane %v186, 2
    %v188 = vadd.f32 %v186, %v187
    %v189 = vrot.slane %v188, 1
    %v190 = vadd.f32 %v188, %v189
    %v191 = vmul.f32 %v190, %v178
    %v192 = vadd.f32 %v191, 1e-05
    %v193 = vrsqrt.pop %v192
    %v194 = vld [vmem:[%s4] sm:$0x1]
    %v195 = vmul.f32 %v193, %v194
    %v196 = vlaneseq
    %v197 = vshrl.u32 %v196, 7
    %v198 = vsub.s32 0, %v197
    %v199 = vrot.slane %v195, %v198
    %v200 = vmul.f32 %v180, %v199
    %v201 = vmul.f32 %v181, %v199
    %v202 = vld [vmem:[%s5] sm:$0x1]
    %v204 = vlaneseq
    %v205 = vshrl.u32 %v204, 7
    %v206 = vsub.s32 0, %v205
    %v207 = vrot.slane %v202, %v206
    %v209 = vadd.f32 %v200, %v207
    %v210 = vadd.f32 %v201, %v207
    %211 = vst [vmem:[#allocation8] sm:$0xff] %v209
    %212 = vst [vmem:[#allocation8 + $0x8] sm:$0xff] %v210
    // Predicated region
    $region34: #{tpu_custom_call.1} parent=1 // pred_check
      _
    $region35: #{tpu_custom_call.1} parent=1 // pred_check_branch
      %214 = sbr.rel (0) target = $region37
    $region36: #{tpu_custom_call.1} parent=1 // pred_region
      %s216 = ssub.s32 256, 256
      %217 = vsyncadd [#allocation5], %s216
      %s218 = sshll.u32 [#allocation8], 4
      %s219 = int_to_ptr.vmem [resolvable:$true] %s218
      %224 = dma.vmem_to_hbm [thread:$0]  %s219, 256, %s6, [#allocation5], 128, 128, 8
    $region37: #{tpu_custom_call.1} parent=1 // pred_fallthru
      _
    // Predicated region
    $region38: #{tpu_custom_call.1} parent=1 // pred_check
      _
    $region39: #{tpu_custom_call.1} parent=1 // pred_check_branch
      %226 = sbr.rel (0) target = $region41
    $region40: #{tpu_custom_call.1} parent=1 // pred_region
      %227 = dma.done [#allocation5], 256
    $region41: #{tpu_custom_call.1} parent=1 // pred_fallthru
      _
    %228 = vsyncpa [#allocation4], 1
    %229 = vsyncpa [#allocation7], 1
    %230 = vsyncpa [#allocation5], 1

</llo_original>
